<compile_context>
chip_gen: v7x
topology: tpu7x:2x2x1
jax: 0.10.0
libtpu: 0.0.40
codegen_flags: <defaults>
</compile_context>

<pallas_src>
import functools

import jax
import jax.numpy as jnp
from jax.experimental import pallas as pl
from jax.experimental.pallas import tpu as pltpu


def _round_up(x, m):
    return ((x + m - 1) // m) * m


def _vmem_capacity_bytes():
    try:
        return int(pltpu.get_tpu_info().vmem_capacity_bytes)
    except Exception:
        return 64 * 1024 * 1024  # conservative fallback: v7x per-TC VMEM


def _decoder_kernel(z_ref, lib_ref, w_scale_ref, w_drop_ref, *out_refs,
                    g_valid, with_rate):
    if with_rate:
        px_scale_ref, px_rate_ref, px_drop_ref = out_refs
    else:
        (px_scale_ref, px_drop_ref), px_rate_ref = out_refs, None

    z = z_ref[...]

    # Dropout-decoder logits first: their f32 slab is dead before the softmax
    # chain starts, lowering peak VMEM / vreg pressure.
    px_drop_ref[...] = jnp.dot(
        z, w_drop_ref[...], preferred_element_type=jnp.float32
    ).astype(px_drop_ref.dtype)

    raw = jnp.dot(z, w_scale_ref[...], preferred_element_type=jnp.float32)
    if g_valid is not None:
        # Genes were zero-padded up to a lane multiple; mask padded logits so
        # they do not contaminate the softmax denominator.
        col = jax.lax.broadcasted_iota(jnp.int32, raw.shape, dimension=1)
        raw = jnp.where(col < g_valid, raw, -jnp.inf)

    m = jnp.max(raw, axis=-1, keepdims=True)
    e = jnp.exp(raw - m)
    denom = jnp.sum(e, axis=-1, keepdims=True)
    px_scale = e / denom  # exact divide: rows must sum to 1
    px_scale_ref[...] = px_scale.astype(px_scale_ref.dtype)

    if with_rate:
        px_rate = jnp.exp(lib_ref[...].astype(jnp.float32)) * px_scale
        px_rate_ref[...] = px_rate.astype(px_rate_ref.dtype)


def prepare_linear_decoder_weights(w_scale, w_dropout,
                                   compute_dtype=jnp.bfloat16):
    """Hoist the per-forward weight cast / gene-axis padding (call once at init).

    Returns (w_scale_c, w_dropout_c, n_output).  Feeding the returned arrays
    plus n_output back into linear_decoder_scvi makes the per-call prepare a
    no-op, removing the repeated D*2G HBM round-trip of cast/concat per call.
    """
    assert w_scale.shape == w_dropout.shape
    _, g = w_scale.shape
    g_pad = _round_up(g, 128)
    ws = w_scale.astype(compute_dtype)
    wd = w_dropout.astype(compute_dtype)
    if g_pad != g:
        pad = ((0, 0), (0, g_pad - g))
        ws = jnp.pad(ws, pad)
        wd = jnp.pad(wd, pad)
    return ws, wd, g


def linear_decoder_scvi(dispersion, z, library, w_scale, w_dropout, *,
                        n_output=None, compute_dtype=jnp.bfloat16,
                        out_dtype=None, block_rows=None, compute_px_rate=True):
    """Pallas implementation of LinearDecoderSCVI.forward.

    Args:
      dispersion: unused string (API parity with the torch module).
      z:         (B, n_input) float
      library:   (B, 1)       float
      w_scale:   (n_input, n_output) factor-regressor weight (torch weight, transposed)
      w_dropout: (n_input, n_output) dropout-decoder weight (torch weight, transposed)
      n_output:  true gene count when the weights were pre-prepared (padded);
                 None => w_scale.shape[1].
      compute_dtype: dtype fed to the MXU (accumulation is always f32).
      out_dtype: output dtype; bfloat16 halves HBM writeback on this
                 store-bound kernel. Defaults to z.dtype.
      block_rows: optional batch tile override (multiple of 8).
      compute_px_rate: if False, px_rate is returned as None (one fewer (B, G)
                 HBM writeback).

    Returns:
      (px_scale, px_r, px_rate, px_dropout) with px_r = None.
    """
    del dispersion
    B, D = z.shape
    G = int(n_output) if n_output is not None else int(w_scale.shape[1])
    out_dtype = out_dtype or z.dtype

    # No-op if the caller already ran prepare_linear_decoder_weights.
    w_scale_c, w_drop_c, _ = prepare_linear_decoder_weights(
        w_scale, w_dropout, compute_dtype)
    G_pad = int(w_scale_c.shape[1])
    g_valid = None if G_pad == G else G

    c_size = jnp.dtype(compute_dtype).itemsize
    o_size = jnp.dtype(out_dtype).itemsize
    n_out = 3 if compute_px_rate else 2

    # ---- generation-aware VMEM budget (v7x: 64 MiB, v5e/v6e: 128 MiB) ------
    vmem_cap = _vmem_capacity_bytes()
    vmem_budget = (vmem_cap * 5) // 8   # ~40 MiB on v7x, ~80 MiB on v5e/v6e
    vmem_limit = (vmem_cap * 3) // 4    # ~48 MiB on v7x, ~96 MiB on v5e/v6e

    w_bytes = 2 * D * G_pad * c_size    # single-buffered resident weights

    def fits(tb):
        io = 2 * tb * (D * c_size + 4)             # z + library tiles, dbl-buffered
        io += 2 * n_out * tb * G_pad * o_size      # output tiles, dbl-buffered
        interm = 4 * tb * G_pad * 4                # f32 slabs: raw, e, scale, rate
        return w_bytes + io + interm <= vmem_budget

    if block_rows is not None:
        assert block_rows % 8 == 0, "block_rows must be a multiple of 8"
        TB = int(block_rows)
    elif B <= 1024 and fits(B):
        TB = B                                     # single whole-batch block
    else:
        TB = min(1024, _round_up(B, 8))
        while TB > 8 and not fits(TB):
            TB = _round_up(TB // 2, 8)
        TB = max(8, TB)

    grid = (pl.cdiv(B, TB),)   # ragged tail handled by masked boundary stores

    z_c = z.astype(compute_dtype)
    lib_f32 = library.astype(jnp.float32)

    out_shapes = tuple(jax.ShapeDtypeStruct((B, G_pad), out_dtype)
                       for _ in range(n_out))
    out_specs = tuple(pl.BlockSpec((TB, G_pad), lambda i: (i, 0))
                      for _ in range(n_out))

    kernel = functools.partial(_decoder_kernel, g_valid=g_valid,
                               with_rate=compute_px_rate)

    def _call(weight_pipeline_mode):
        weight_spec = pl.BlockSpec((D, G_pad), lambda i: (0, 0),
                                   pipeline_mode=weight_pipeline_mode)
        in_specs = [
            pl.BlockSpec((TB, D), lambda i: (i, 0)),   # z tile
            pl.BlockSpec((TB, 1), lambda i: (i, 0)),   # library tile
            weight_spec,                               # resident W_scale
            weight_spec,                               # resident W_dropout
        ]
        return pl.pallas_call(
            kernel,
            out_shape=out_shapes,
            grid=grid,
            in_specs=in_specs,
            out_specs=out_specs,
            compiler_params=pltpu.CompilerParams(
                dimension_semantics=("parallel",),     # megacore sharding on v7x
                vmem_limit_bytes=vmem_limit),
        )(z_c, lib_f32, w_scale_c, w_drop_c)

    try:
        # Single-buffer the resident weights: constant index_map => the second
        # pipeline buffer is pure VMEM waste (saves D*2G*c_size bytes).
        outs = _call(pl.Buffered(1))
    except Exception:
        outs = _call(None)   # fall back to default double buffering

    if compute_px_rate:
        px_scale, px_rate, px_dropout = outs
    else:
        px_scale, px_dropout = outs
        px_rate = None

    if G_pad != G:
        # TODO(synk): this post-slice re-copies outputs through HBM once, but
        # it keeps every in-kernel store lane-dense (cheaper than vst.msk).
        px_scale = px_scale[:, :G]
        px_dropout = px_dropout[:, :G]
        if px_rate is not None:
            px_rate = px_rate[:, :G]

    px_r = None
    return px_scale, px_r, px_rate, px_dropout


def _reference(z, library, w_scale, w_dropout, compute_dtype=jnp.bfloat16):
    """Plain-JAX reference using the same bf16 matmul inputs / f32 accumulation."""
    zc = z.astype(compute_dtype)
    raw = jnp.dot(zc, w_scale.astype(compute_dtype),
                  preferred_element_type=jnp.float32)
    px_scale = jax.nn.softmax(raw, axis=-1)
    px_dropout = jnp.dot(zc, w_dropout.astype(compute_dtype),
                         preferred_element_type=jnp.float32)
    px_rate = jnp.exp(library) * px_scale
    return px_scale, None, px_rate, px_dropout


if __name__ == "__main__":
    # Small shapes consistent with the module: batch=20 cells, latent n_input=32,
    # n_output=256 genes.
    B, n_input, n_output = 20, 32, 256

    key = jax.random.PRNGKey(0)
    k_z, k_lib, k_ws, k_wd = jax.random.split(key, 4)

    z = jax.random.normal(k_z, (B, n_input), dtype=jnp.float32)
    library = jax.random.normal(k_lib, (B, 1), dtype=jnp.float32)
    # nn.Linear weights, stored transposed: (n_input, n_output).
    w_scale = jax.random.normal(k_ws, (n_input, n_output), dtype=jnp.float32) * 0.05
    w_dropout = jax.random.normal(k_wd, (n_input, n_output), dtype=jnp.float32) * 0.05

    # Hoist the weight cast / gene padding out of the per-forward path (done once).
    w_scale_c, w_drop_c, g_true = prepare_linear_decoder_weights(w_scale, w_dropout)

    # block_rows=8 forces a multi-step, ragged grid (20 = 2*8 + 4) so batch
    # tiling and the masked boundary-store path are actually exercised.
    px_scale, px_r, px_rate, px_dropout = linear_decoder_scvi(
        "gene", z, library, w_scale_c, w_drop_c, n_output=g_true, block_rows=8)
    jax.block_until_ready((px_scale, px_rate, px_dropout))

    # Correctness check against a plain-JAX reference with matching precision.
    ref_scale, _, ref_rate, ref_dropout = _reference(z, library, w_scale, w_dropout)
    assert px_r is None
    assert px_scale.shape == (B, n_output)
    assert px_rate.shape == (B, n_output)
    assert px_dropout.shape == (B, n_output)
    assert bool(jnp.all(jnp.isfinite(px_scale)))
    assert jnp.allclose(px_scale, ref_scale, atol=1e-3, rtol=1e-2)
    assert jnp.allclose(px_rate, ref_rate, atol=1e-3, rtol=1e-2)
    assert jnp.allclose(px_dropout, ref_dropout, atol=1e-3, rtol=1e-2)
    # Exact-divide softmax: rows sum to 1 tightly.
    assert jnp.allclose(jnp.sum(px_scale, axis=-1), 1.0, atol=1e-3)

    # Also exercise the auto-tile path and the px_rate opt-out (raw weights in).
    s2, r2_none, r2, d2 = linear_decoder_scvi(
        "gene", z, library, w_scale, w_dropout, compute_px_rate=False)
    jax.block_until_ready((s2, d2))
    assert r2 is None and r2_none is None
    assert jnp.allclose(s2, ref_scale, atol=1e-3, rtol=1e-2)
    assert jnp.allclose(d2, ref_dropout, atol=1e-3, rtol=1e-2)

    print("KERNEL_OK")
</pallas_src>

<mosaic_0001>
module attributes {stable_mosaic.version = 11 : i64} {
  func.func @_decoder_kernel(%arg0: i32, %arg1: memref<8x32xbf16, #tpu.memory_space<vmem>>, %arg2: memref<8x1xf32, #tpu.memory_space<vmem>>, %arg3: memref<32x256xbf16, #tpu.memory_space<vmem>>, %arg4: memref<32x256xbf16, #tpu.memory_space<vmem>>, %arg5: memref<8x256xf32, #tpu.memory_space<vmem>>, %arg6: memref<8x256xf32, #tpu.memory_space<vmem>>, %arg7: memref<8x256xf32, #tpu.memory_space<vmem>>) attributes {dimension_semantics = [#tpu.dimension_semantics<parallel>], iteration_bounds = array<i64: 3>, scalar_prefetch = 0 : i64, scratch_operands = 0 : i64, tpu.core_type = #tpu.core_type<tc>, window_params = [{transform_indices = @transform_0, window_bounds = array<i64: 8, 32>}, {transform_indices = @transform_1, window_bounds = array<i64: 8, 1>}, {pipeline_mode = #tpu.pipeline_mode<synchronous>, transform_indices = @transform_2, window_bounds = array<i64: 32, 256>}, {pipeline_mode = #tpu.pipeline_mode<synchronous>, transform_indices = @transform_3, window_bounds = array<i64: 32, 256>}, {transform_indices = @transform_4, window_bounds = array<i64: 8, 256>}, {transform_indices = @transform_5, window_bounds = array<i64: 8, 256>}, {transform_indices = @transform_6, window_bounds = array<i64: 8, 256>}]} {
    %c0 = arith.constant 0 : index
    %c0_0 = arith.constant 0 : index
    %0 = vector.load %arg1[%c0, %c0_0] : memref<8x32xbf16, #tpu.memory_space<vmem>>, vector<8x32xbf16>
    %c0_1 = arith.constant 0 : index
    %c0_2 = arith.constant 0 : index
    %1 = vector.load %arg4[%c0_1, %c0_2] : memref<32x256xbf16, #tpu.memory_space<vmem>>, vector<32x256xbf16>
    %cst = arith.constant dense<0.000000e+00> : vector<8x256xf32>
    %2 = tpu.matmul %0, %1, %cst {dimension_numbers = #tpu.dot_dimension_numbers<[1], [0], [0], [1], [0, 0, 1, 1], [], []>} : vector<8x32xbf16>, vector<32x256xbf16>, vector<8x256xf32> -> vector<8x256xf32>
    %c0_3 = arith.constant 0 : index
    %c0_4 = arith.constant 0 : index
    %3 = vector.load %arg7[%c0_3, %c0_4] : memref<8x256xf32, #tpu.memory_space<vmem>>, vector<8x256xf32>
    tpu.vector_store %arg7[%c0_3, %c0_4], %2 {strides = array<i32>} : memref<8x256xf32, #tpu.memory_space<vmem>>, vector<8x256xf32>,
    %c0_5 = arith.constant 0 : index
    %c0_6 = arith.constant 0 : index
    %4 = vector.load %arg3[%c0_5, %c0_6] : memref<32x256xbf16, #tpu.memory_space<vmem>>, vector<32x256xbf16>
    %cst_7 = arith.constant dense<0.000000e+00> : vector<8x256xf32>
    %5 = tpu.matmul %0, %4, %cst_7 {dimension_numbers = #tpu.dot_dimension_numbers<[1], [0], [0], [1], [0, 0, 1, 1], [], []>} : vector<8x32xbf16>, vector<32x256xbf16>, vector<8x256xf32> -> vector<8x256xf32>
    %cst_8 = arith.constant dense<0xFF800000> : vector<8xf32>
    %6 = vector.multi_reduction <maximumf>, %5, %cst_8 [1] : vector<8x256xf32> to vector<8xf32>
    %7 = vector.shape_cast %6 : vector<8xf32> to vector<8x1xf32>
    %8 = vector.broadcast %7 : vector<8x1xf32> to vector<8x256xf32>
    %9 = arith.subf %5, %8 : vector<8x256xf32>
    %10 = math.exp %9 : vector<8x256xf32>
    %cst_9 = arith.constant dense<0.000000e+00> : vector<8xf32>
    %11 = vector.multi_reduction <add>, %10, %cst_9 [1] : vector<8x256xf32> to vector<8xf32>
    %12 = vector.shape_cast %11 : vector<8xf32> to vector<8x1xf32>
    %13 = vector.broadcast %12 : vector<8x1xf32> to vector<8x256xf32>
    %14 = arith.divf %10, %13 : vector<8x256xf32>
    %c0_10 = arith.constant 0 : index
    %c0_11 = arith.constant 0 : index
    %15 = vector.load %arg5[%c0_10, %c0_11] : memref<8x256xf32, #tpu.memory_space<vmem>>, vector<8x256xf32>
    tpu.vector_store %arg5[%c0_10, %c0_11], %14 {strides = array<i32>} : memref<8x256xf32, #tpu.memory_space<vmem>>, vector<8x256xf32>,
    %c0_12 = arith.constant 0 : index
    %c0_13 = arith.constant 0 : index
    %16 = vector.load %arg2[%c0_12, %c0_13] : memref<8x1xf32, #tpu.memory_space<vmem>>, vector<8x1xf32>
    %17 = math.exp %16 : vector<8x1xf32>
    %18 = vector.broadcast %17 : vector<8x1xf32> to vector<8x256xf32>
    %19 = arith.mulf %18, %14 : vector<8x256xf32>
    %c0_14 = arith.constant 0 : index
    %c0_15 = arith.constant 0 : index
    %20 = vector.load %arg6[%c0_14, %c0_15] : memref<8x256xf32, #tpu.memory_space<vmem>>, vector<8x256xf32>
    tpu.vector_store %arg6[%c0_14, %c0_15], %19 {strides = array<i32>} : memref<8x256xf32, #tpu.memory_space<vmem>>, vector<8x256xf32>,
    return
  }
  func.func @transform_0(%arg0: i32) -> (i32, i32) {
    %c0_i32 = arith.constant 0 : i32
    %c0_i32_0 = arith.constant 0 : i32
    return %arg0, %c0_i32 : i32, i32
  }
  func.func @transform_1(%arg0: i32) -> (i32, i32) {
    %c0_i32 = arith.constant 0 : i32
    %c0_i32_0 = arith.constant 0 : i32
    return %arg0, %c0_i32 : i32, i32
  }
  func.func @transform_2(%arg0: i32) -> (i32, i32) {
    %c0_i32 = arith.constant 0 : i32
    %c0_i32_0 = arith.constant 0 : i32
    %c0_i32_1 = arith.constant 0 : i32
    return %c0_i32, %c0_i32_0 : i32, i32
  }
  func.func @transform_3(%arg0: i32) -> (i32, i32) {
    %c0_i32 = arith.constant 0 : i32
    %c0_i32_0 = arith.constant 0 : i32
    %c0_i32_1 = arith.constant 0 : i32
    return %c0_i32, %c0_i32_0 : i32, i32
  }
  func.func @transform_4(%arg0: i32) -> (i32, i32) {
    %c0_i32 = arith.constant 0 : i32
    %c0_i32_0 = arith.constant 0 : i32
    return %arg0, %c0_i32 : i32, i32
  }
  func.func @transform_5(%arg0: i32) -> (i32, i32) {
    %c0_i32 = arith.constant 0 : i32
    %c0_i32_0 = arith.constant 0 : i32
    return %arg0, %c0_i32 : i32, i32
  }
  func.func @transform_6(%arg0: i32) -> (i32, i32) {
    %c0_i32 = arith.constant 0 : i32
    %c0_i32_0 = arith.constant 0 : i32
    return %arg0, %c0_i32 : i32, i32
  }
}

module attributes {stable_mosaic.version = 11 : i64} {
  func.func @_decoder_kernel(%arg0: i32, %arg1: memref<8x32xbf16, #tpu.memory_space<vmem>>, %arg2: memref<8x1xf32, #tpu.memory_space<vmem>>, %arg3: memref<32x256xbf16, #tpu.memory_space<vmem>>, %arg4: memref<32x256xbf16, #tpu.memory_space<vmem>>, %arg5: memref<8x256xf32, #tpu.memory_space<vmem>>, %arg6: memref<8x256xf32, #tpu.memory_space<vmem>>, %arg7: memref<8x256xf32, #tpu.memory_space<vmem>>) attributes {dimension_semantics = [#tpu.dimension_semantics<parallel>], iteration_bounds = array<i64: 3>, scalar_prefetch = 0 : i64, scratch_operands = 0 : i64, tpu.core_type = #tpu.core_type<tc>, window_params = [{transform_indices = @transform_0, window_bounds = array<i64: 8, 32>}, {transform_indices = @transform_1, window_bounds = array<i64: 8, 1>}, {pipeline_mode = #tpu.pipeline_mode<synchronous>, transform_indices = @transform_2, window_bounds = array<i64: 32, 256>}, {pipeline_mode = #tpu.pipeline_mode<synchronous>, transform_indices = @transform_3, window_bounds = array<i64: 32, 256>}, {transform_indices = @transform_4, window_bounds = array<i64: 8, 256>}, {transform_indices = @transform_5, window_bounds = array<i64: 8, 256>}, {transform_indices = @transform_6, window_bounds = array<i64: 8, 256>}]} {
    %c0 = arith.constant 0 : index
    %c0_0 = arith.constant 0 : index
    %0 = vector.load %arg1[%c0, %c0_0] : memref<8x32xbf16, #tpu.memory_space<vmem>>, vector<8x32xbf16>
    %c0_1 = arith.constant 0 : index
    %c0_2 = arith.constant 0 : index
    %1 = vector.load %arg4[%c0_1, %c0_2] : memref<32x256xbf16, #tpu.memory_space<vmem>>, vector<32x256xbf16>
    %cst = arith.constant dense<0.000000e+00> : vector<8x256xf32>
    %2 = tpu.matmul %0, %1, %cst {dimension_numbers = #tpu.dot_dimension_numbers<[1], [0], [0], [1], [0, 0, 1, 1], [], []>} : vector<8x32xbf16>, vector<32x256xbf16>, vector<8x256xf32> -> vector<8x256xf32>
    %c0_3 = arith.constant 0 : index
    %c0_4 = arith.constant 0 : index
    %3 = vector.load %arg7[%c0_3, %c0_4] : memref<8x256xf32, #tpu.memory_space<vmem>>, vector<8x256xf32>
    tpu.vector_store %arg7[%c0_3, %c0_4], %2 {strides = array<i32>} : memref<8x256xf32, #tpu.memory_space<vmem>>, vector<8x256xf32>,
    %c0_5 = arith.constant 0 : index
    %c0_6 = arith.constant 0 : index
    %4 = vector.load %arg3[%c0_5, %c0_6] : memref<32x256xbf16, #tpu.memory_space<vmem>>, vector<32x256xbf16>
    %cst_7 = arith.constant dense<0.000000e+00> : vector<8x256xf32>
    %5 = tpu.matmul %0, %4, %cst_7 {dimension_numbers = #tpu.dot_dimension_numbers<[1], [0], [0], [1], [0, 0, 1, 1], [], []>} : vector<8x32xbf16>, vector<32x256xbf16>, vector<8x256xf32> -> vector<8x256xf32>
    %cst_8 = arith.constant dense<0xFF800000> : vector<8xf32>
    %6 = vector.multi_reduction <maximumf>, %5, %cst_8 [1] : vector<8x256xf32> to vector<8xf32>
    %7 = vector.shape_cast %6 : vector<8xf32> to vector<8x1xf32>
    %8 = vector.broadcast %7 : vector<8x1xf32> to vector<8x256xf32>
    %9 = arith.subf %5, %8 : vector<8x256xf32>
    %10 = math.exp %9 : vector<8x256xf32>
    %cst_9 = arith.constant dense<0.000000e+00> : vector<8xf32>
    %11 = vector.multi_reduction <add>, %10, %cst_9 [1] : vector<8x256xf32> to vector<8xf32>
    %12 = vector.shape_cast %11 : vector<8xf32> to vector<8x1xf32>
    %13 = vector.broadcast %12 : vector<8x1xf32> to vector<8x256xf32>
    %14 = arith.divf %10, %13 : vector<8x256xf32>
    %c0_10 = arith.constant 0 : index
    %c0_11 = arith.constant 0 : index
    %15 = vector.load %arg5[%c0_10, %c0_11] : memref<8x256xf32, #tpu.memory_space<vmem>>, vector<8x256xf32>
    tpu.vector_store %arg5[%c0_10, %c0_11], %14 {strides = array<i32>} : memref<8x256xf32, #tpu.memory_space<vmem>>, vector<8x256xf32>,
    %c0_12 = arith.constant 0 : index
    %c0_13 = arith.constant 0 : index
    %16 = vector.load %arg2[%c0_12, %c0_13] : memref<8x1xf32, #tpu.memory_space<vmem>>, vector<8x1xf32>
    %17 = math.exp %16 : vector<8x1xf32>
    %18 = vector.broadcast %17 : vector<8x1xf32> to vector<8x256xf32>
    %19 = arith.mulf %18, %14 : vector<8x256xf32>
    %c0_14 = arith.constant 0 : index
    %c0_15 = arith.constant 0 : index
    %20 = vector.load %arg6[%c0_14, %c0_15] : memref<8x256xf32, #tpu.memory_space<vmem>>, vector<8x256xf32>
    tpu.vector_store %arg6[%c0_14, %c0_15], %19 {strides = array<i32>} : memref<8x256xf32, #tpu.memory_space<vmem>>, vector<8x256xf32>,
    return
  }
  func.func @transform_0(%arg0: i32) -> (i32, i32) {
    %c0_i32 = arith.constant 0 : i32
    %c0_i32_0 = arith.constant 0 : i32
    return %arg0, %c0_i32 : i32, i32
  }
  func.func @transform_1(%arg0: i32) -> (i32, i32) {
    %c0_i32 = arith.constant 0 : i32
    %c0_i32_0 = arith.constant 0 : i32
    return %arg0, %c0_i32 : i32, i32
  }
  func.func @transform_2(%arg0: i32) -> (i32, i32) {
    %c0_i32 = arith.constant 0 : i32
    %c0_i32_0 = arith.constant 0 : i32
    %c0_i32_1 = arith.constant 0 : i32
    return %c0_i32, %c0_i32_0 : i32, i32
  }
  func.func @transform_3(%arg0: i32) -> (i32, i32) {
    %c0_i32 = arith.constant 0 : i32
    %c0_i32_0 = arith.constant 0 : i32
    %c0_i32_1 = arith.constant 0 : i32
    return %c0_i32, %c0_i32_0 : i32, i32
  }
  func.func @transform_4(%arg0: i32) -> (i32, i32) {
    %c0_i32 = arith.constant 0 : i32
    %c0_i32_0 = arith.constant 0 : i32
    return %arg0, %c0_i32 : i32, i32
  }
  func.func @transform_5(%arg0: i32) -> (i32, i32) {
    %c0_i32 = arith.constant 0 : i32
    %c0_i32_0 = arith.constant 0 : i32
    return %arg0, %c0_i32 : i32, i32
  }
  func.func @transform_6(%arg0: i32) -> (i32, i32) {
    %c0_i32 = arith.constant 0 : i32
    %c0_i32_0 = arith.constant 0 : i32
    return %arg0, %c0_i32 : i32, i32
  }
}

</mosaic_0001>

<llo_original>
// kernel: tpu_custom_call.1
$region0: #{tpu_custom_call.1}
  #allocation0 [shape = 'u32[]', space=smem, size = 0x4, offset = 0x4, fixed_abs, tag = 'smem constant byte address 0x4 - core index']
  #allocation1 [shape = 'u32[144,128]{1,0:T(1,128)}', space=vmem, size = 0x12000, scoped, tag = 'internal scratch']
  %s0 = inlined_call_operand.hbm [shape: bf16[20,32], index: 0, kind: input, shape index: {}]
  %s1 = inlined_call_operand.vmem [shape: f32[20,1], index: 1, kind: input, shape index: {}]
  %s2 = inlined_call_operand.vmem [shape: bf16[32,256], index: 2, kind: input, shape index: {}]
  %s3 = inlined_call_operand.hbm [shape: bf16[32,256], index: 3, kind: input, shape index: {}]
  %s4 = inlined_call_operand.hbm [shape: f32[20,256], index: 4, kind: output, shape index: {0}]
  %s5 = inlined_call_operand.hbm [shape: f32[20,256], index: 5, kind: output, shape index: {1}]
  %s6 = inlined_call_operand.hbm [shape: f32[20,256], index: 6, kind: output, shape index: {2}]
  %7 = xla_tuple %s4, %s5, %s6
  %s8 = sld [smem:[#allocation0]]
  $region73: #{tpu_custom_call.1} parent=0
    _
  %s10 = ssub.s32 1, %s8
  %s11 = scalar_select 0, %s10, %s8
  $region1: #{tpu_custom_call.1} parent=0
    #allocation2 [shape = 'u8[4096]{0}', space=vmem, size = 0x1000, scoped, tag = 'input window, operand 0']
    #allocation3 [shape = 's32[2]{0}', space=sflag, size = 0x8, scoped, tag = 'scoped memory for tpu_custom_call.1']
    #allocation4 [shape = 's32[2]{0}', space=sflag, size = 0x8, scoped, tag = 'scoped memory for tpu_custom_call.1']
    #allocation5 [shape = 'u8[16384]{0}', space=vmem, size = 0x4000, scoped, tag = 'input window, operand 3, single buffered']
    #allocation6 [shape = 's32[1]{0}', space=sflag, size = 0x4, scoped, tag = 'scoped memory for tpu_custom_call.1']
    #allocation7 [shape = 'u8[16384]{0}', space=vmem, size = 0x4000, scoped, tag = 'output window, operand 0']
    #allocation8 [shape = 'u8[16384]{0}', space=vmem, size = 0x4000, scoped, tag = 'output window, operand 1']
    #allocation9 [shape = 's32[2]{0}', space=sflag, size = 0x8, scoped, tag = 'scoped memory for tpu_custom_call.1']
    #allocation10 [shape = 'u8[16384]{0}', space=vmem, size = 0x4000, scoped, tag = 'output window, operand 2']
    %12 = vsyncpa [#allocation3], 0
    %s13 = scalar_lea.sflag [#allocation3], 1
    %14 = vsyncpa %s13, 0
    %15 = vsyncpa [#allocation6], 0
    %16 = vsyncpa [#allocation4], 0
    %s17 = scalar_lea.sflag [#allocation4], 1
    %18 = vsyncpa %s17, 0
    %19 = vsyncpa [#allocation9], 0
    %s20 = scalar_lea.sflag [#allocation9], 1
    %21 = vsyncpa %s20, 0
    loop: start=0, step=1, limit=5
    $region2: #{tpu_custom_call.1} parent=1 // loop_pre_header
      _
    $region3: #{tpu_custom_call.1} parent=1 // loop_header
      %s23 = sphi 0, %s27
      %p24 = scmp.ge.s32.totalorder %s23, 5
      %s33 = sphi 0, %s35
      %s36 = sphi 0, %s33
      %s37 = sphi 0, %s36
      %s53 = sphi 0, %s37
      %s59 = sphi 0, %s61
      %s62 = sphi 0, %s59
      %s63 = sphi 0, %s62
      %s79 = sphi 0, %s63
      %s83 = sphi 0, %s83
      %s85 = sphi 0, %s83
      %s86 = sphi 0, %s85
      %s100 = sphi 0, %s86
      %s104 = sphi 0, %s104
      %s106 = sphi 0, %s104
      %s107 = sphi 0, %s106
      %s121 = sphi 0, %s107
      %s127 = sphi 0, %s129
      %s130 = sphi 0, %s127
      %s131 = sphi 0, %s130
      %s147 = sphi 0, %s131
      %s153 = sphi 0, %s155
      %s156 = sphi 0, %s153
      %s157 = sphi 0, %s156
      %s173 = sphi 0, %s157
      %s179 = sphi 0, %s181
      %s182 = sphi 0, %s179
      %s183 = sphi 0, %s182
      %s199 = sphi 0, %s183
    $region4: #{tpu_custom_call.1} parent=1 // loop_header_branch
      %26 = sbr.rel (%p24) target = $region8
    $region5: #{tpu_custom_call.1} parent=1 // loop_body
      %s28 = ssub.s32 %s23, 1
      %s29 = ssub.s32 %s23, 2
      %s30 = sadd.s32 %s23, 1
      %s31 = ssub.s32 %s23, %s30
      %p32 = scmp.eq.s32.totalorder %s31, 0
      %s34 = sadd.s32 %s33, 1
      %s35 = scalar_select %p32, %s33, %s34
      %p38 = pneg %p32
      %p39 = scmp.eq.s32.totalorder %s23, 2
      %p40 = por %p38, %p39
      %p41 = scmp.ne.s32.totalorder %s33, %s36
      %p42 = scmp.eq.s32.totalorder %s23, 0
      %p43 = por %p41, %p42
      %p44 = scmp.ne.s32.totalorder %s33, %s36
      %p45 = scmp.eq.s32.totalorder %s28, 2
      %p46 = por %p44, %p45
      %p47 = scmp.ne.s32.totalorder %s36, %s37
      %p48 = scmp.eq.s32.totalorder %s28, 0
      %p49 = por %p47, %p48
      %p50 = scmp.ne.s32.totalorder %s36, %s37
      %p51 = scmp.eq.s32.totalorder %s29, 2
      %p52 = por %p50, %p51
      %p54 = scmp.ne.s32.totalorder %s37, %s53
      %p55 = scmp.eq.s32.totalorder %s29, 0
      %p56 = por %p54, %p55
      %s57 = ssub.s32 %s23, %s30
      %p58 = scmp.eq.s32.totalorder %s57, 0
      %s60 = sadd.s32 %s59, 1
      %s61 = scalar_select %p58, %s59, %s60
      %p64 = pneg %p58
      %p65 = scmp.eq.s32.totalorder %s23, 2
      %p66 = por %p64, %p65
      %p67 = scmp.ne.s32.totalorder %s59, %s62
      %p68 = scmp.eq.s32.totalorder %s23, 0
      %p69 = por %p67, %p68
      %p70 = scmp.ne.s32.totalorder %s59, %s62
      %p71 = scmp.eq.s32.totalorder %s28, 2
      %p72 = por %p70, %p71
      %p73 = scmp.ne.s32.totalorder %s62, %s63
      %p74 = scmp.eq.s32.totalorder %s28, 0
      %p75 = por %p73, %p74
      %p76 = scmp.ne.s32.totalorder %s62, %s63
      %p77 = scmp.eq.s32.totalorder %s29, 2
      %p78 = por %p76, %p77
      %p80 = scmp.ne.s32.totalorder %s63, %s79
      %p81 = scmp.eq.s32.totalorder %s29, 0
      %p82 = por %p80, %p81
      %s84 = sadd.s32 %s83, 1
      %p87 = scmp.eq.s32.totalorder %s23, 2
      %p88 = scmp.ne.s32.totalorder %s83, %s85
      %p89 = scmp.eq.s32.totalorder %s23, 0
      %p90 = por %p88, %p89
      %p91 = scmp.ne.s32.totalorder %s83, %s85
      %p92 = scmp.eq.s32.totalorder %s28, 2
      %p93 = por %p91, %p92
      %p94 = scmp.ne.s32.totalorder %s85, %s86
      %p95 = scmp.eq.s32.totalorder %s28, 0
      %p96 = por %p94, %p95
      %p97 = scmp.ne.s32.totalorder %s85, %s86
      %p98 = scmp.eq.s32.totalorder %s29, 2
      %p99 = por %p97, %p98
      %p101 = scmp.ne.s32.totalorder %s86, %s100
      %p102 = scmp.eq.s32.totalorder %s29, 0
      %p103 = por %p101, %p102
      %s105 = sadd.s32 %s104, 1
      %p108 = scmp.eq.s32.totalorder %s23, 2
      %p109 = scmp.ne.s32.totalorder %s104, %s106
      %p110 = scmp.eq.s32.totalorder %s23, 0
      %p111 = por %p109, %p110
      %p112 = scmp.ne.s32.totalorder %s104, %s106
      %p113 = scmp.eq.s32.totalorder %s28, 2
      %p114 = por %p112, %p113
      %p115 = scmp.ne.s32.totalorder %s106, %s107
      %p116 = scmp.eq.s32.totalorder %s28, 0
      %p117 = por %p115, %p116
      %p118 = scmp.ne.s32.totalorder %s106, %s107
      %p119 = scmp.eq.s32.totalorder %s29, 2
      %p120 = por %p118, %p119
      %p122 = scmp.ne.s32.totalorder %s107, %s121
      %p123 = scmp.eq.s32.totalorder %s29, 0
      %p124 = por %p122, %p123
      %s125 = ssub.s32 %s23, %s30
      %p126 = scmp.eq.s32.totalorder %s125, 0
      %s128 = sadd.s32 %s127, 1
      %s129 = scalar_select %p126, %s127, %s128
      %p132 = pneg %p126
      %p133 = scmp.eq.s32.totalorder %s23, 2
      %p134 = por %p132, %p133
      %p135 = scmp.ne.s32.totalorder %s127, %s130
      %p136 = scmp.eq.s32.totalorder %s23, 0
      %p137 = por %p135, %p136
      %p138 = scmp.ne.s32.totalorder %s127, %s130
      %p139 = scmp.eq.s32.totalorder %s28, 2
      %p140 = por %p138, %p139
      %p141 = scmp.ne.s32.totalorder %s130, %s131
      %p142 = scmp.eq.s32.totalorder %s28, 0
      %p143 = por %p141, %p142
      %p144 = scmp.ne.s32.totalorder %s130, %s131
      %p145 = scmp.eq.s32.totalorder %s29, 2
      %p146 = por %p144, %p145
      %p148 = scmp.ne.s32.totalorder %s131, %s147
      %p149 = scmp.eq.s32.totalorder %s29, 0
      %p150 = por %p148, %p149
      %s151 = ssub.s32 %s23, %s30
      %p152 = scmp.eq.s32.totalorder %s151, 0
      %s154 = sadd.s32 %s153, 1
      %s155 = scalar_select %p152, %s153, %s154
      %p158 = pneg %p152
      %p159 = scmp.eq.s32.totalorder %s23, 2
      %p160 = por %p158, %p159
      %p161 = scmp.ne.s32.totalorder %s153, %s156
      %p162 = scmp.eq.s32.totalorder %s23, 0
      %p163 = por %p161, %p162
      %p164 = scmp.ne.s32.totalorder %s153, %s156
      %p165 = scmp.eq.s32.totalorder %s28, 2
      %p166 = por %p164, %p165
      %p167 = scmp.ne.s32.totalorder %s156, %s157
      %p168 = scmp.eq.s32.totalorder %s28, 0
      %p169 = por %p167, %p168
      %p170 = scmp.ne.s32.totalorder %s156, %s157
      %p171 = scmp.eq.s32.totalorder %s29, 2
      %p172 = por %p170, %p171
      %p174 = scmp.ne.s32.totalorder %s157, %s173
      %p175 = scmp.eq.s32.totalorder %s29, 0
      %p176 = por %p174, %p175
      %s177 = ssub.s32 %s23, %s30
      %p178 = scmp.eq.s32.totalorder %s177, 0
      %s180 = sadd.s32 %s179, 1
      %s181 = scalar_select %p178, %s179, %s180
      %p184 = pneg %p178
      %p185 = scmp.eq.s32.totalorder %s23, 2
      %p186 = por %p184, %p185
      %p187 = scmp.ne.s32.totalorder %s179, %s182
      %p188 = scmp.eq.s32.totalorder %s23, 0
      %p189 = por %p187, %p188
      %p190 = scmp.ne.s32.totalorder %s179, %s182
      %p191 = scmp.eq.s32.totalorder %s28, 2
      %p192 = por %p190, %p191
      %p193 = scmp.ne.s32.totalorder %s182, %s183
      %p194 = scmp.eq.s32.totalorder %s28, 0
      %p195 = por %p193, %p194
      %p196 = scmp.ne.s32.totalorder %s182, %s183
      %p197 = scmp.eq.s32.totalorder %s29, 2
      %p198 = por %p196, %p197
      %p200 = scmp.ne.s32.totalorder %s183, %s199
      %p201 = scmp.eq.s32.totalorder %s29, 0
      %p202 = por %p200, %p201
      %p203 = scmp.le.s32.totalorder 1, %s23
      %p204 = scmp.lt.s32.totalorder %s23, 4
      %p205 = pnand %p203, %p204
      %p206 = pneg %p205
      // Predicated region
      $region9: #{tpu_custom_call.1} parent=5 // pred_check
        _
      $region10: #{tpu_custom_call.1} parent=5 // pred_check_branch
        %208 = sbr.rel (%p205) target = $region12
      $region11: #{tpu_custom_call.1} parent=5 // pred_region
        %s209 = ssub.s32 %s23, 1
        // Predicated region
        $region13: #{tpu_custom_call.1} parent=11 // pred_check
          %p210 = pneg %p96
        $region14: #{tpu_custom_call.1} parent=11 // pred_check_branch
          %212 = sbr.rel (%p210) target = $region16
        $region15: #{tpu_custom_call.1} parent=11 // pred_region
          _
        $region16: #{tpu_custom_call.1} parent=11 // pred_fallthru
          _
        // Predicated region
        $region17: #{tpu_custom_call.1} parent=11 // pred_check
          %p213 = pneg %p117
        $region18: #{tpu_custom_call.1} parent=11 // pred_check_branch
          %215 = sbr.rel (%p213) target = $region20
        $region19: #{tpu_custom_call.1} parent=11 // pred_region
          %s217 = ssub.s32 512, 512
          %218 = vsyncadd [#allocation6], %s217
          %s219 = sshll.u32 [#allocation5], 4
          %s220 = int_to_ptr.vmem [resolvable:$true] %s219
          %225 = dma.hbm_to_vmem [thread:$0]  %s3, 512, %s220, [#allocation6], 128, 128, 8
        $region20: #{tpu_custom_call.1} parent=11 // pred_fallthru
          _
      $region12: #{tpu_custom_call.1} parent=5 // pred_fallthru
        _
      %p226 = scmp.lt.s32.totalorder %s23, 3
      // Predicated region
      $region21: #{tpu_custom_call.1} parent=5 // pred_check
        %p227 = pneg %p226
      $region22: #{tpu_custom_call.1} parent=5 // pred_check_branch
        %229 = sbr.rel (%p227) target = $region24
      $region23: #{tpu_custom_call.1} parent=5 // pred_region
        // Predicated region
        $region25: #{tpu_custom_call.1} parent=23 // pred_check
          %p230 = pneg %p43
        $region26: #{tpu_custom_call.1} parent=23 // pred_check_branch
          %232 = sbr.rel (%p230) target = $region28
        $region27: #{tpu_custom_call.1} parent=23 // pred_region
          %s233 = sand.u32 %s33, 1
          %s234 = scalar_lea.sflag [#allocation3], %s233
          %s235 = sand.u32 %s33, 1
          %s236 = smul.addr %s235, 4
          %s237 = scalar_lea.vmem [#allocation2], %s236
          %s239 = ssub.s32 64, 64
          %240 = vsyncadd %s234, %s239
          %s241 = smul.addr %s23, 64
          %s242 = scalar_lea.hbm %s0, %s241
          %s244 = sshll.u32 %s237, 4
          %s245 = int_to_ptr.vmem [resolvable:$true] %s244
          %247 = dma.hbm_to_vmem [thread:$0]  %s242, 64, %s245, %s234
        $region28: #{tpu_custom_call.1} parent=23 // pred_fallthru
          _
        // Predicated region
        $region29: #{tpu_custom_call.1} parent=23 // pred_check
          %p248 = pneg %p69
        $region30: #{tpu_custom_call.1} parent=23 // pred_check_branch
          %250 = sbr.rel (%p248) target = $region32
        $region31: #{tpu_custom_call.1} parent=23 // pred_region
          %p251 = scmp.lt.s32.totalorder %s23, 2
          %s252 = scalar_select %p251, %s23, 2
          %s253 = smul.addr %s252, 8
          %s254 = scalar_lea.vmem %s1, %s253
        $region32: #{tpu_custom_call.1} parent=23 // pred_fallthru
          _
      $region24: #{tpu_custom_call.1} parent=5 // pred_fallthru
        _
      %p255 = scmp.le.s32.totalorder 1, %s23
      %p256 = scmp.lt.s32.totalorder %s23, 4
      %p257 = pnand %p255, %p256
      %p258 = pneg %p257
      // Predicated region
      $region33: #{tpu_custom_call.1} parent=5 // pred_check
        _
      $region34: #{tpu_custom_call.1} parent=5 // pred_check_branch
        %260 = sbr.rel (%p257) target = $region36
      $region35: #{tpu_custom_call.1} parent=5 // pred_region
        %s261 = ssub.s32 %s23, 1
        %s262 = sand.u32 %s36, 1
        %s263 = scalar_lea.sflag [#allocation3], %s262
        %s264 = sand.u32 %s36, 1
        %s265 = smul.addr %s264, 4
        %s266 = scalar_lea.vmem [#allocation2], %s265
        // Predicated region
        $region37: #{tpu_custom_call.1} parent=35 // pred_check
          %p267 = pneg %p49
        $region38: #{tpu_custom_call.1} parent=35 // pred_check_branch
          %269 = sbr.rel (%p267) target = $region40
        $region39: #{tpu_custom_call.1} parent=35 // pred_region
          %270 = dma.done %s263, 64
        $region40: #{tpu_custom_call.1} parent=35 // pred_fallthru
          _
        // Predicated region
        $region41: #{tpu_custom_call.1} parent=35 // pred_check
          %p271 = pneg %p117
        $region42: #{tpu_custom_call.1} parent=35 // pred_check_branch
          %273 = sbr.rel (%p271) target = $region44
        $region43: #{tpu_custom_call.1} parent=35 // pred_region
          %274 = dma.done [#allocation6], 512
        $region44: #{tpu_custom_call.1} parent=35 // pred_fallthru
          _
        %s275 = sand.u32 %s36, 1
        %s276 = scalar_lea.sflag [#allocation3], %s275
        %s277 = sand.u32 %s36, 1
        %s278 = smul.addr %s277, 4
        %s279 = scalar_lea.vmem [#allocation2], %s278
        %p280 = pneg %p49
        %p281 = pneg %p46
        %p282 = scmp.lt.s32.totalorder %s28, 2
        %s283 = scalar_select %p282, %s28, 2
        %s284 = smul.addr %s283, 8
        %s285 = scalar_lea.vmem %s1, %s284
        %p286 = pneg %p75
        %p287 = pneg %p72
        %p288 = pneg %p96
        %p289 = pneg %p93
        %p290 = pneg %p117
        %p291 = pneg %p114
        %p292 = pneg %p143
        %p293 = pneg %p140
        %s294 = sand.u32 %s130, 1
        %s295 = scalar_lea.sflag [#allocation4], %s294
        %s296 = sand.u32 %s130, 1
        %s297 = smul.addr %s296, 16
        %s298 = scalar_lea.vmem [#allocation7], %s297
        %p299 = pneg %p169
        %p300 = pneg %p166
        %s301 = sand.u32 %s28, 1
        %s302 = scalar_lea.sflag [#allocation9], %s301
        %s303 = sand.u32 %s156, 1
        %s304 = smul.addr %s303, 16
        %s305 = scalar_lea.vmem [#allocation8], %s304
        %p306 = pneg %p195
        %p307 = pneg %p192
        %s308 = sand.u32 %s28, 1
        %s309 = scalar_lea.sflag [#allocation9], %s308
        %s310 = sand.u32 %s182, 1
        %s311 = smul.addr %s310, 16
        %s312 = scalar_lea.vmem [#allocation10], %s311
        %p313 = scmp.lt.s32.totalorder %s28, 2
        %s314 = scalar_select %p313, %s28, 2
        %s315 = smul.addr %s314, 8
        %s316 = scalar_lea.vmem %s1, %s315
        %v318 = vld [vmem:[%s266] sm:$0xf]
        %v319 = vld [vmem:[#allocation5] sm:$0xff]
        %v320 = vld [vmem:[#allocation5 + $0x8] sm:$0xff]
        %v321 = vld [vmem:[#allocation5 + $0x10] sm:$0xff]
        %v322 = vld [vmem:[#allocation5 + $0x18] sm:$0xff]
        %v327 = vunpack.c.l.b16 %v319
        %v328 = vunpack.c.h.b16 %v319
        %v329 = vunpack.c.l.b16 %v320
        %v330 = vunpack.c.h.b16 %v320
        %v331 = vunpack.c.l.b16 %v321
        %v332 = vunpack.c.h.b16 %v321
        %v333 = vunpack.c.l.b16 %v322
        %v334 = vunpack.c.h.b16 %v322
        %v335 = vpack.c.b16 %v329, %v327
        %v336 = vpack.c.b16 %v330, %v328
        %v337 = vpack.c.b16 %v333, %v331
        %v338 = vpack.c.b16 %v334, %v332
        %vm343 = vcmask 261120
        %v345 = vsel %vm343, %v318, 0
        %347 = vmatprep.subr.bf16.mxu0 %v336
        %348 = vmatpush1.bf16.msra.mxu0 %v335
        %349 = vmatprep.subr.bf16.mxu0 %v338
        %350 = vmatpush1.bf16.msra.mxu0 %v337
        %351 = vmatprep.subr.bf16.mxu0 0
        %352 = vmatpush1.bf16.msra.mxu0 0
        %353 = vmatprep.subr.bf16.mxu0 0
        %354 = vmatpush1.bf16.msra.mxu0 0
        %355 = vmatprep.subr.bf16.mxu0 0
        %356 = vmatpush1.bf16.msra.mxu0 0
        %357 = vmatprep.subr.bf16.mxu0 0
        %358 = vmatpush1.bf16.msra.mxu0 0
        %359 = vmatprep.subr.bf16.mxu0 0
        %360 = vmatpush1.bf16.msra.mxu0 0
        %361 = vmatprep.subr.bf16.mxu0 0
        %362 = vmatpush1.bf16.msra.mxu0 0
        %363 = vmatprep.subr.bf16.mxu0 0
        %364 = vmatpush1.bf16.msra.mxu0 0
        %365 = vmatprep.subr.bf16.mxu0 0
        %366 = vmatpush1.bf16.msra.mxu0 0
        %367 = vmatprep.subr.bf16.mxu0 0
        %368 = vmatpush1.bf16.msra.mxu0 0
        %369 = vmatprep.subr.bf16.mxu0 0
        %370 = vmatpush1.bf16.msra.mxu0 0
        %371 = vmatprep.subr.bf16.mxu0 0
        %372 = vmatpush1.bf16.msra.mxu0 0
        %373 = vmatprep.subr.bf16.mxu0 0
        %374 = vmatpush1.bf16.msra.mxu0 0
        %375 = vmatprep.subr.bf16.mxu0 0
        %376 = vmatpush1.bf16.msra.mxu0 0
        %377 = vmatprep.subr.bf16.mxu0 0
        %378 = vmatpush1.bf16.msra.mxu0 0
        %379 = vmatprep.mubr.bf16.mxu0 0
        %380 = vmatmul.mubr.bf16.gmra.mrb[0].mxu0 %v345
        %v381 = vpop.f32.mrb[0].mxu0
        %v382 = vadd.f32 0.0, %v381
        %v383 = vpop.f32.mrb[0].mxu0
        %v384 = vadd.f32 0.0, %v383
        %v385 = vpop.f32.mrb[0].mxu0
        %v386 = vpop.f32.mrb[0].mxu0
        %387 = vdwg.mxu0
        %388 = vst [vmem:[%s312] sm:$0xff] %v382
        %389 = vst [vmem:[%s312 + $0x8] sm:$0xff] %v384
        %v390 = vld [vmem:[%s2] sm:$0xff]
        %v391 = vld [vmem:[%s2 + $0x8] sm:$0xff]
        %v392 = vld [vmem:[%s2 + $0x10] sm:$0xff]
        %v393 = vld [vmem:[%s2 + $0x18] sm:$0xff]
        %v398 = vunpack.c.l.b16 %v390
        %v399 = vunpack.c.h.b16 %v390
        %v400 = vunpack.c.l.b16 %v391
        %v401 = vunpack.c.h.b16 %v391
        %v402 = vunpack.c.l.b16 %v392
        %v403 = vunpack.c.h.b16 %v392
        %v404 = vunpack.c.l.b16 %v393
        %v405 = vunpack.c.h.b16 %v393
        %v406 = vpack.c.b16 %v400, %v398
        %v407 = vpack.c.b16 %v401, %v399
        %v408 = vpack.c.b16 %v404, %v402
        %v409 = vpack.c.b16 %v405, %v403
        %414 = vmatprep.subr.bf16.mxu0 %v407
        %415 = vmatpush1.bf16.msra.mxu0 %v406
        %416 = vmatprep.subr.bf16.mxu0 %v409
        %417 = vmatpush1.bf16.msra.mxu0 %v408
        %418 = vmatprep.subr.bf16.mxu0 0
        %419 = vmatpush1.bf16.msra.mxu0 0
        %420 = vmatprep.subr.bf16.mxu0 0
        %421 = vmatpush1.bf16.msra.mxu0 0
        %422 = vmatprep.subr.bf16.mxu0 0
        %423 = vmatpush1.bf16.msra.mxu0 0
        %424 = vmatprep.subr.bf16.mxu0 0
        %425 = vmatpush1.bf16.msra.mxu0 0
        %426 = vmatprep.subr.bf16.mxu0 0
        %427 = vmatpush1.bf16.msra.mxu0 0
        %428 = vmatprep.subr.bf16.mxu0 0
        %429 = vmatpush1.bf16.msra.mxu0 0
        %430 = vmatprep.subr.bf16.mxu0 0
        %431 = vmatpush1.bf16.msra.mxu0 0
        %432 = vmatprep.subr.bf16.mxu0 0
        %433 = vmatpush1.bf16.msra.mxu0 0
        %434 = vmatprep.subr.bf16.mxu0 0
        %435 = vmatpush1.bf16.msra.mxu0 0
        %436 = vmatprep.subr.bf16.mxu0 0
        %437 = vmatpush1.bf16.msra.mxu0 0
        %438 = vmatprep.subr.bf16.mxu0 0
        %439 = vmatpush1.bf16.msra.mxu0 0
        %440 = vmatprep.subr.bf16.mxu0 0
        %441 = vmatpush1.bf16.msra.mxu0 0
        %442 = vmatprep.subr.bf16.mxu0 0
        %443 = vmatpush1.bf16.msra.mxu0 0
        %444 = vmatprep.subr.bf16.mxu0 0
        %445 = vmatpush1.bf16.msra.mxu0 0
        %446 = vmatprep.mubr.bf16.mxu0 0
        %447 = vmatmul.mubr.bf16.gmra.mrb[0].mxu0 %v345
        %v448 = vpop.f32.mrb[0].mxu0
        %v449 = vadd.f32 0.0, %v448
        %v450 = vpop.f32.mrb[0].mxu0
        %v451 = vadd.f32 0.0, %v450
        %v452 = vpop.f32.mrb[0].mxu0
        %v453 = vpop.f32.mrb[0].mxu0
        %454 = vdwg.mxu0
        %v455 = vmax.f32 %v449, %v451
        %456 = vmax.xlane.f32.xlu0 %v455
        %v457 = vpop.xlane.xlu0 %456
        %v458 = vsub.f32 %v449, %v457
        %v459 = vsub.f32 %v451, %v457
        %v460 = vmul.f32 %v458, 1.442695
        %v461 = vpow.pop %v460
        %v462 = vmul.f32 %v459, 1.442695
        %v463 = vpow.pop %v462
        %v464 = vadd.f32 %v461, %v463
        %465 = vadd.xlane.f32.xlu0 %v464
        %v466 = vpop.xlane.xlu0 %465
        %v467 = vrcp.pop %v466
        %v468 = vmul.f32 %v461, %v467
        %v469 = vmul.f32 %v463, %v467
        %470 = vst [vmem:[%s298] sm:$0xff] %v468
        %471 = vst [vmem:[%s298 + $0x8] sm:$0xff] %v469
        %v472 = vld [vmem:[%s316] sm:$0xff]
        %v473 = vmul.f32 %v472, 1.442695
        %v474 = vpow.pop %v473
        %476 = vset.pattern.permute.xlu0 0
        %477 = vperm.xlu0 %476, %v474
        %v478 = vpop.permute.xlu0 %477
        %v480 = vmul.f32 %v478, %v468
        %v481 = vmul.f32 %v478, %v469
        %482 = vst [vmem:[%s305] sm:$0xff] %v480
        %483 = vst [vmem:[%s305 + $0x8] sm:$0xff] %v481
        %s484 = sand.u32 %s130, 1
        %s485 = scalar_lea.sflag [#allocation4], %s484
        %s486 = sand.u32 %s130, 1
        %s487 = smul.addr %s486, 16
        %s488 = scalar_lea.vmem [#allocation7], %s487
        %s489 = sand.u32 %s28, 1
        %s490 = scalar_lea.sflag [#allocation9], %s489
        %s491 = sand.u32 %s156, 1
        %s492 = smul.addr %s491, 16
        %s493 = scalar_lea.vmem [#allocation8], %s492
        %s494 = sand.u32 %s28, 1
        %s495 = scalar_lea.sflag [#allocation9], %s494
        %s496 = sand.u32 %s182, 1
        %s497 = smul.addr %s496, 16
        %s498 = scalar_lea.vmem [#allocation10], %s497
        // Predicated region
        $region45: #{tpu_custom_call.1} parent=35 // pred_check
          %p499 = pneg %p140
        $region46: #{tpu_custom_call.1} parent=35 // pred_check_branch
          %501 = sbr.rel (%p499) target = $region48
        $region47: #{tpu_custom_call.1} parent=35 // pred_region
          %s503 = ssub.s32 256, 256
          %504 = vsyncadd %s485, %s503
          %s505 = smul.addr %s28, 2
          %s506 = smul.addr %s505, 128
          %s507 = scalar_lea.hbm %s4, %s506
          %s509 = sshll.u32 %s488, 4
          %s510 = int_to_ptr.vmem [resolvable:$true] %s509
          %512 = dma.vmem_to_hbm [thread:$0]  %s510, 256, %s507, %s485
        $region48: #{tpu_custom_call.1} parent=35 // pred_fallthru
          _
        // Predicated region
        $region49: #{tpu_custom_call.1} parent=35 // pred_check
          %p513 = pneg %p166
        $region50: #{tpu_custom_call.1} parent=35 // pred_check_branch
          %515 = sbr.rel (%p513) target = $region52
        $region51: #{tpu_custom_call.1} parent=35 // pred_region
          %s517 = ssub.s32 256, 256
          %518 = vsyncadd %s490, %s517
          %s519 = smul.addr %s28, 2
          %s520 = smul.addr %s519, 128
          %s521 = scalar_lea.hbm %s5, %s520
          %s523 = sshll.u32 %s493, 4
          %s524 = int_to_ptr.vmem [resolvable:$true] %s523
          %526 = dma.vmem_to_hbm [thread:$0]  %s524, 256, %s521, %s490
        $region52: #{tpu_custom_call.1} parent=35 // pred_fallthru
          _
        // Predicated region
        $region53: #{tpu_custom_call.1} parent=35 // pred_check
          %p527 = pneg %p192
        $region54: #{tpu_custom_call.1} parent=35 // pred_check_branch
          %529 = sbr.rel (%p527) target = $region56
        $region55: #{tpu_custom_call.1} parent=35 // pred_region
          %s531 = ssub.s32 256, 256
          %532 = vsyncadd %s495, %s531
          %s533 = smul.addr %s28, 2
          %s534 = smul.addr %s533, 128
          %s535 = scalar_lea.hbm %s6, %s534
          %s537 = sshll.u32 %s498, 4
          %s538 = int_to_ptr.vmem [resolvable:$true] %s537
          %540 = dma.vmem_to_hbm [thread:$0]  %s538, 256, %s535, %s495
        $region56: #{tpu_custom_call.1} parent=35 // pred_fallthru
          _
      $region36: #{tpu_custom_call.1} parent=5 // pred_fallthru
        _
      %p541 = scmp.le.s32.totalorder 2, %s23
      // Predicated region
      $region57: #{tpu_custom_call.1} parent=5 // pred_check
        %p542 = pneg %p541
      $region58: #{tpu_custom_call.1} parent=5 // pred_check_branch
        %544 = sbr.rel (%p542) target = $region60
      $region59: #{tpu_custom_call.1} parent=5 // pred_region
        %s545 = ssub.s32 %s23, 2
        // Predicated region
        $region61: #{tpu_custom_call.1} parent=59 // pred_check
          %p546 = pneg %p146
        $region62: #{tpu_custom_call.1} parent=59 // pred_check_branch
          %548 = sbr.rel (%p546) target = $region64
        $region63: #{tpu_custom_call.1} parent=59 // pred_region
          %s549 = sand.u32 %s131, 1
          %s550 = scalar_lea.sflag [#allocation4], %s549
          %s551 = sand.u32 %s131, 1
          %s552 = smul.addr %s551, 16
          %s553 = scalar_lea.vmem [#allocation7], %s552
          %554 = dma.done %s550, 256
        $region64: #{tpu_custom_call.1} parent=59 // pred_fallthru
          _
        // Predicated region
        $region65: #{tpu_custom_call.1} parent=59 // pred_check
          %p555 = pneg %p172
        $region66: #{tpu_custom_call.1} parent=59 // pred_check_branch
          %557 = sbr.rel (%p555) target = $region68
        $region67: #{tpu_custom_call.1} parent=59 // pred_region
          %s558 = sand.u32 %s29, 1
          %s559 = scalar_lea.sflag [#allocation9], %s558
          %s560 = sand.u32 %s157, 1
          %s561 = smul.addr %s560, 16
          %s562 = scalar_lea.vmem [#allocation8], %s561
          %563 = dma.done %s559, 256
        $region68: #{tpu_custom_call.1} parent=59 // pred_fallthru
          _
        // Predicated region
        $region69: #{tpu_custom_call.1} parent=59 // pred_check
          %p564 = pneg %p198
        $region70: #{tpu_custom_call.1} parent=59 // pred_check_branch
          %566 = sbr.rel (%p564) target = $region72
        $region71: #{tpu_custom_call.1} parent=59 // pred_region
          %s567 = sand.u32 %s29, 1
          %s568 = scalar_lea.sflag [#allocation9], %s567
          %s569 = sand.u32 %s183, 1
          %s570 = smul.addr %s569, 16
          %s571 = scalar_lea.vmem [#allocation10], %s570
          %572 = dma.done %s568, 256
        $region72: #{tpu_custom_call.1} parent=59 // pred_fallthru
          _
      $region60: #{tpu_custom_call.1} parent=5 // pred_fallthru
        _
    $region6: #{tpu_custom_call.1} parent=1 // loop_footer
      %s27 = sadd.s32 1, %s23
    $region7: #{tpu_custom_call.1} parent=1 // loop_footer_branch
      %22 = sbr.rel target = $region3
    $region8: #{tpu_custom_call.1} parent=1 // loop_exit
      _
    %573 = vsyncpa [#allocation3], 1
    %s574 = scalar_lea.sflag [#allocation3], 1
    %575 = vsyncpa %s574, 1
    %576 = vsyncpa [#allocation6], 1
    %577 = vsyncpa [#allocation4], 1
    %s578 = scalar_lea.sflag [#allocation4], 1
    %579 = vsyncpa %s578, 1
    %580 = vsyncpa [#allocation9], 1
    %s581 = scalar_lea.sflag [#allocation9], 1
    %582 = vsyncpa %s581, 1

// kernel: tpu_custom_call.1
$region0: #{tpu_custom_call.1}
  #allocation0 [shape = 'u32[]', space=smem, size = 0x4, offset = 0x4, fixed_abs, tag = 'smem constant byte address 0x4 - core index']
  #allocation1 [shape = 'u32[144,128]{1,0:T(1,128)}', space=vmem, size = 0x12000, scoped, tag = 'internal scratch']
  %s0 = inlined_call_operand.hbm [shape: bf16[20,32], index: 0, kind: input, shape index: {}]
  %s1 = inlined_call_operand.vmem [shape: f32[20,1], index: 1, kind: input, shape index: {}]
  %s2 = inlined_call_operand.vmem [shape: bf16[32,256], index: 2, kind: input, shape index: {}]
  %s3 = inlined_call_operand.hbm [shape: bf16[32,256], index: 3, kind: input, shape index: {}]
  %s4 = inlined_call_operand.hbm [shape: f32[20,256], index: 4, kind: output, shape index: {0}]
  %s5 = inlined_call_operand.hbm [shape: f32[20,256], index: 5, kind: output, shape index: {1}]
  %s6 = inlined_call_operand.hbm [shape: f32[20,256], index: 6, kind: output, shape index: {2}]
  %7 = xla_tuple %s4, %s5, %s6
  %s8 = sld [smem:[#allocation0]]
  $region73: #{tpu_custom_call.1} parent=0
    _
  %s10 = ssub.s32 1, %s8
  %s11 = scalar_select 0, %s10, %s8
  $region1: #{tpu_custom_call.1} parent=0
    #allocation2 [shape = 'u8[4096]{0}', space=vmem, size = 0x1000, scoped, tag = 'input window, operand 0']
    #allocation3 [shape = 's32[2]{0}', space=sflag, size = 0x8, scoped, tag = 'scoped memory for tpu_custom_call.1']
    #allocation4 [shape = 's32[2]{0}', space=sflag, size = 0x8, scoped, tag = 'scoped memory for tpu_custom_call.1']
    #allocation5 [shape = 'u8[16384]{0}', space=vmem, size = 0x4000, scoped, tag = 'input window, operand 3, single buffered']
    #allocation6 [shape = 's32[1]{0}', space=sflag, size = 0x4, scoped, tag = 'scoped memory for tpu_custom_call.1']
    #allocation7 [shape = 'u8[16384]{0}', space=vmem, size = 0x4000, scoped, tag = 'output window, operand 0']
    #allocation8 [shape = 'u8[16384]{0}', space=vmem, size = 0x4000, scoped, tag = 'output window, operand 1']
    #allocation9 [shape = 's32[2]{0}', space=sflag, size = 0x8, scoped, tag = 'scoped memory for tpu_custom_call.1']
    #allocation10 [shape = 'u8[16384]{0}', space=vmem, size = 0x4000, scoped, tag = 'output window, operand 2']
    %12 = vsyncpa [#allocation3], 0
    %s13 = scalar_lea.sflag [#allocation3], 1
    %14 = vsyncpa %s13, 0
    %15 = vsyncpa [#allocation6], 0
    %16 = vsyncpa [#allocation4], 0
    %s17 = scalar_lea.sflag [#allocation4], 1
    %18 = vsyncpa %s17, 0
    %19 = vsyncpa [#allocation9], 0
    %s20 = scalar_lea.sflag [#allocation9], 1
    %21 = vsyncpa %s20, 0
    loop: start=0, step=1, limit=5
    $region2: #{tpu_custom_call.1} parent=1 // loop_pre_header
      _
    $region3: #{tpu_custom_call.1} parent=1 // loop_header
      %s23 = sphi 0, %s27
      %p24 = scmp.ge.s32.totalorder %s23, 5
      %s33 = sphi 0, %s35
      %s36 = sphi 0, %s33
      %s37 = sphi 0, %s36
      %s53 = sphi 0, %s37
      %s59 = sphi 0, %s61
      %s62 = sphi 0, %s59
      %s63 = sphi 0, %s62
      %s79 = sphi 0, %s63
      %s83 = sphi 0, %s83
      %s85 = sphi 0, %s83
      %s86 = sphi 0, %s85
      %s100 = sphi 0, %s86
      %s104 = sphi 0, %s104
      %s106 = sphi 0, %s104
      %s107 = sphi 0, %s106
      %s121 = sphi 0, %s107
      %s127 = sphi 0, %s129
      %s130 = sphi 0, %s127
      %s131 = sphi 0, %s130
      %s147 = sphi 0, %s131
      %s153 = sphi 0, %s155
      %s156 = sphi 0, %s153
      %s157 = sphi 0, %s156
      %s173 = sphi 0, %s157
      %s179 = sphi 0, %s181
      %s182 = sphi 0, %s179
      %s183 = sphi 0, %s182
      %s199 = sphi 0, %s183
    $region4: #{tpu_custom_call.1} parent=1 // loop_header_branch
      %26 = sbr.rel (%p24) target = $region8
    $region5: #{tpu_custom_call.1} parent=1 // loop_body
      %s28 = ssub.s32 %s23, 1
      %s29 = ssub.s32 %s23, 2
      %s30 = sadd.s32 %s23, 1
      %s31 = ssub.s32 %s23, %s30
      %p32 = scmp.eq.s32.totalorder %s31, 0
      %s34 = sadd.s32 %s33, 1
      %s35 = scalar_select %p32, %s33, %s34
      %p38 = pneg %p32
      %p39 = scmp.eq.s32.totalorder %s23, 2
      %p40 = por %p38, %p39
      %p41 = scmp.ne.s32.totalorder %s33, %s36
      %p42 = scmp.eq.s32.totalorder %s23, 0
      %p43 = por %p41, %p42
      %p44 = scmp.ne.s32.totalorder %s33, %s36
      %p45 = scmp.eq.s32.totalorder %s28, 2
      %p46 = por %p44, %p45
      %p47 = scmp.ne.s32.totalorder %s36, %s37
      %p48 = scmp.eq.s32.totalorder %s28, 0
      %p49 = por %p47, %p48
      %p50 = scmp.ne.s32.totalorder %s36, %s37
      %p51 = scmp.eq.s32.totalorder %s29, 2
      %p52 = por %p50, %p51
      %p54 = scmp.ne.s32.totalorder %s37, %s53
      %p55 = scmp.eq.s32.totalorder %s29, 0
      %p56 = por %p54, %p55
      %s57 = ssub.s32 %s23, %s30
      %p58 = scmp.eq.s32.totalorder %s57, 0
      %s60 = sadd.s32 %s59, 1
      %s61 = scalar_select %p58, %s59, %s60
      %p64 = pneg %p58
      %p65 = scmp.eq.s32.totalorder %s23, 2
      %p66 = por %p64, %p65
      %p67 = scmp.ne.s32.totalorder %s59, %s62
      %p68 = scmp.eq.s32.totalorder %s23, 0
      %p69 = por %p67, %p68
      %p70 = scmp.ne.s32.totalorder %s59, %s62
      %p71 = scmp.eq.s32.totalorder %s28, 2
      %p72 = por %p70, %p71
      %p73 = scmp.ne.s32.totalorder %s62, %s63
      %p74 = scmp.eq.s32.totalorder %s28, 0
      %p75 = por %p73, %p74
      %p76 = scmp.ne.s32.totalorder %s62, %s63
      %p77 = scmp.eq.s32.totalorder %s29, 2
      %p78 = por %p76, %p77
      %p80 = scmp.ne.s32.totalorder %s63, %s79
      %p81 = scmp.eq.s32.totalorder %s29, 0
      %p82 = por %p80, %p81
      %s84 = sadd.s32 %s83, 1
      %p87 = scmp.eq.s32.totalorder %s23, 2
      %p88 = scmp.ne.s32.totalorder %s83, %s85
      %p89 = scmp.eq.s32.totalorder %s23, 0
      %p90 = por %p88, %p89
      %p91 = scmp.ne.s32.totalorder %s83, %s85
      %p92 = scmp.eq.s32.totalorder %s28, 2
      %p93 = por %p91, %p92
      %p94 = scmp.ne.s32.totalorder %s85, %s86
      %p95 = scmp.eq.s32.totalorder %s28, 0
      %p96 = por %p94, %p95
      %p97 = scmp.ne.s32.totalorder %s85, %s86
      %p98 = scmp.eq.s32.totalorder %s29, 2
      %p99 = por %p97, %p98
      %p101 = scmp.ne.s32.totalorder %s86, %s100
      %p102 = scmp.eq.s32.totalorder %s29, 0
      %p103 = por %p101, %p102
      %s105 = sadd.s32 %s104, 1
      %p108 = scmp.eq.s32.totalorder %s23, 2
      %p109 = scmp.ne.s32.totalorder %s104, %s106
      %p110 = scmp.eq.s32.totalorder %s23, 0
      %p111 = por %p109, %p110
      %p112 = scmp.ne.s32.totalorder %s104, %s106
      %p113 = scmp.eq.s32.totalorder %s28, 2
      %p114 = por %p112, %p113
      %p115 = scmp.ne.s32.totalorder %s106, %s107
      %p116 = scmp.eq.s32.totalorder %s28, 0
      %p117 = por %p115, %p116
      %p118 = scmp.ne.s32.totalorder %s106, %s107
      %p119 = scmp.eq.s32.totalorder %s29, 2
      %p120 = por %p118, %p119
      %p122 = scmp.ne.s32.totalorder %s107, %s121
      %p123 = scmp.eq.s32.totalorder %s29, 0
      %p124 = por %p122, %p123
      %s125 = ssub.s32 %s23, %s30
      %p126 = scmp.eq.s32.totalorder %s125, 0
      %s128 = sadd.s32 %s127, 1
      %s129 = scalar_select %p126, %s127, %s128
      %p132 = pneg %p126
      %p133 = scmp.eq.s32.totalorder %s23, 2
      %p134 = por %p132, %p133
      %p135 = scmp.ne.s32.totalorder %s127, %s130
      %p136 = scmp.eq.s32.totalorder %s23, 0
      %p137 = por %p135, %p136
      %p138 = scmp.ne.s32.totalorder %s127, %s130
      %p139 = scmp.eq.s32.totalorder %s28, 2
      %p140 = por %p138, %p139
      %p141 = scmp.ne.s32.totalorder %s130, %s131
      %p142 = scmp.eq.s32.totalorder %s28, 0
      %p143 = por %p141, %p142
      %p144 = scmp.ne.s32.totalorder %s130, %s131
      %p145 = scmp.eq.s32.totalorder %s29, 2
      %p146 = por %p144, %p145
      %p148 = scmp.ne.s32.totalorder %s131, %s147
      %p149 = scmp.eq.s32.totalorder %s29, 0
      %p150 = por %p148, %p149
      %s151 = ssub.s32 %s23, %s30
      %p152 = scmp.eq.s32.totalorder %s151, 0
      %s154 = sadd.s32 %s153, 1
      %s155 = scalar_select %p152, %s153, %s154
      %p158 = pneg %p152
      %p159 = scmp.eq.s32.totalorder %s23, 2
      %p160 = por %p158, %p159
      %p161 = scmp.ne.s32.totalorder %s153, %s156
      %p162 = scmp.eq.s32.totalorder %s23, 0
      %p163 = por %p161, %p162
      %p164 = scmp.ne.s32.totalorder %s153, %s156
      %p165 = scmp.eq.s32.totalorder %s28, 2
      %p166 = por %p164, %p165
      %p167 = scmp.ne.s32.totalorder %s156, %s157
      %p168 = scmp.eq.s32.totalorder %s28, 0
      %p169 = por %p167, %p168
      %p170 = scmp.ne.s32.totalorder %s156, %s157
      %p171 = scmp.eq.s32.totalorder %s29, 2
      %p172 = por %p170, %p171
      %p174 = scmp.ne.s32.totalorder %s157, %s173
      %p175 = scmp.eq.s32.totalorder %s29, 0
      %p176 = por %p174, %p175
      %s177 = ssub.s32 %s23, %s30
      %p178 = scmp.eq.s32.totalorder %s177, 0
      %s180 = sadd.s32 %s179, 1
      %s181 = scalar_select %p178, %s179, %s180
      %p184 = pneg %p178
      %p185 = scmp.eq.s32.totalorder %s23, 2
      %p186 = por %p184, %p185
      %p187 = scmp.ne.s32.totalorder %s179, %s182
      %p188 = scmp.eq.s32.totalorder %s23, 0
      %p189 = por %p187, %p188
      %p190 = scmp.ne.s32.totalorder %s179, %s182
      %p191 = scmp.eq.s32.totalorder %s28, 2
      %p192 = por %p190, %p191
      %p193 = scmp.ne.s32.totalorder %s182, %s183
      %p194 = scmp.eq.s32.totalorder %s28, 0
      %p195 = por %p193, %p194
      %p196 = scmp.ne.s32.totalorder %s182, %s183
      %p197 = scmp.eq.s32.totalorder %s29, 2
      %p198 = por %p196, %p197
      %p200 = scmp.ne.s32.totalorder %s183, %s199
      %p201 = scmp.eq.s32.totalorder %s29, 0
      %p202 = por %p200, %p201
      %p203 = scmp.le.s32.totalorder 1, %s23
      %p204 = scmp.lt.s32.totalorder %s23, 4
      %p205 = pnand %p203, %p204
      %p206 = pneg %p205
      // Predicated region
      $region9: #{tpu_custom_call.1} parent=5 // pred_check
        _
      $region10: #{tpu_custom_call.1} parent=5 // pred_check_branch
        %208 = sbr.rel (%p205) target = $region12
      $region11: #{tpu_custom_call.1} parent=5 // pred_region
        %s209 = ssub.s32 %s23, 1
        // Predicated region
        $region13: #{tpu_custom_call.1} parent=11 // pred_check
          %p210 = pneg %p96
        $region14: #{tpu_custom_call.1} parent=11 // pred_check_branch
          %212 = sbr.rel (%p210) target = $region16
        $region15: #{tpu_custom_call.1} parent=11 // pred_region
          _
        $region16: #{tpu_custom_call.1} parent=11 // pred_fallthru
          _
        // Predicated region
        $region17: #{tpu_custom_call.1} parent=11 // pred_check
          %p213 = pneg %p117
        $region18: #{tpu_custom_call.1} parent=11 // pred_check_branch
          %215 = sbr.rel (%p213) target = $region20
        $region19: #{tpu_custom_call.1} parent=11 // pred_region
          %s217 = ssub.s32 512, 512
          %218 = vsyncadd [#allocation6], %s217
          %s219 = sshll.u32 [#allocation5], 4
          %s220 = int_to_ptr.vmem [resolvable:$true] %s219
          %225 = dma.hbm_to_vmem [thread:$0]  %s3, 512, %s220, [#allocation6], 128, 128, 8
        $region20: #{tpu_custom_call.1} parent=11 // pred_fallthru
          _
      $region12: #{tpu_custom_call.1} parent=5 // pred_fallthru
        _
      %p226 = scmp.lt.s32.totalorder %s23, 3
      // Predicated region
      $region21: #{tpu_custom_call.1} parent=5 // pred_check
        %p227 = pneg %p226
      $region22: #{tpu_custom_call.1} parent=5 // pred_check_branch
        %229 = sbr.rel (%p227) target = $region24
      $region23: #{tpu_custom_call.1} parent=5 // pred_region
        // Predicated region
        $region25: #{tpu_custom_call.1} parent=23 // pred_check
          %p230 = pneg %p43
        $region26: #{tpu_custom_call.1} parent=23 // pred_check_branch
          %232 = sbr.rel (%p230) target = $region28
        $region27: #{tpu_custom_call.1} parent=23 // pred_region
          %s233 = sand.u32 %s33, 1
          %s234 = scalar_lea.sflag [#allocation3], %s233
          %s235 = sand.u32 %s33, 1
          %s236 = smul.addr %s235, 4
          %s237 = scalar_lea.vmem [#allocation2], %s236
          %s239 = ssub.s32 64, 64
          %240 = vsyncadd %s234, %s239
          %s241 = smul.addr %s23, 64
          %s242 = scalar_lea.hbm %s0, %s241
          %s244 = sshll.u32 %s237, 4
          %s245 = int_to_ptr.vmem [resolvable:$true] %s244
          %247 = dma.hbm_to_vmem [thread:$0]  %s242, 64, %s245, %s234
        $region28: #{tpu_custom_call.1} parent=23 // pred_fallthru
          _
        // Predicated region
        $region29: #{tpu_custom_call.1} parent=23 // pred_check
          %p248 = pneg %p69
        $region30: #{tpu_custom_call.1} parent=23 // pred_check_branch
          %250 = sbr.rel (%p248) target = $region32
        $region31: #{tpu_custom_call.1} parent=23 // pred_region
          %p251 = scmp.lt.s32.totalorder %s23, 2
          %s252 = scalar_select %p251, %s23, 2
          %s253 = smul.addr %s252, 8
          %s254 = scalar_lea.vmem %s1, %s253
        $region32: #{tpu_custom_call.1} parent=23 // pred_fallthru
          _
      $region24: #{tpu_custom_call.1} parent=5 // pred_fallthru
        _
      %p255 = scmp.le.s32.totalorder 1, %s23
      %p256 = scmp.lt.s32.totalorder %s23, 4
      %p257 = pnand %p255, %p256
      %p258 = pneg %p257
      // Predicated region
      $region33: #{tpu_custom_call.1} parent=5 // pred_check
        _
      $region34: #{tpu_custom_call.1} parent=5 // pred_check_branch
        %260 = sbr.rel (%p257) target = $region36
      $region35: #{tpu_custom_call.1} parent=5 // pred_region
        %s261 = ssub.s32 %s23, 1
        %s262 = sand.u32 %s36, 1
        %s263 = scalar_lea.sflag [#allocation3], %s262
        %s264 = sand.u32 %s36, 1
        %s265 = smul.addr %s264, 4
        %s266 = scalar_lea.vmem [#allocation2], %s265
        // Predicated region
        $region37: #{tpu_custom_call.1} parent=35 // pred_check
          %p267 = pneg %p49
        $region38: #{tpu_custom_call.1} parent=35 // pred_check_branch
          %269 = sbr.rel (%p267) target = $region40
        $region39: #{tpu_custom_call.1} parent=35 // pred_region
          %270 = dma.done %s263, 64
        $region40: #{tpu_custom_call.1} parent=35 // pred_fallthru
          _
        // Predicated region
        $region41: #{tpu_custom_call.1} parent=35 // pred_check
          %p271 = pneg %p117
        $region42: #{tpu_custom_call.1} parent=35 // pred_check_branch
          %273 = sbr.rel (%p271) target = $region44
        $region43: #{tpu_custom_call.1} parent=35 // pred_region
          %274 = dma.done [#allocation6], 512
        $region44: #{tpu_custom_call.1} parent=35 // pred_fallthru
          _
        %s275 = sand.u32 %s36, 1
        %s276 = scalar_lea.sflag [#allocation3], %s275
        %s277 = sand.u32 %s36, 1
        %s278 = smul.addr %s277, 4
        %s279 = scalar_lea.vmem [#allocation2], %s278
        %p280 = pneg %p49
        %p281 = pneg %p46
        %p282 = scmp.lt.s32.totalorder %s28, 2
        %s283 = scalar_select %p282, %s28, 2
        %s284 = smul.addr %s283, 8
        %s285 = scalar_lea.vmem %s1, %s284
        %p286 = pneg %p75
        %p287 = pneg %p72
        %p288 = pneg %p96
        %p289 = pneg %p93
        %p290 = pneg %p117
        %p291 = pneg %p114
        %p292 = pneg %p143
        %p293 = pneg %p140
        %s294 = sand.u32 %s130, 1
        %s295 = scalar_lea.sflag [#allocation4], %s294
        %s296 = sand.u32 %s130, 1
        %s297 = smul.addr %s296, 16
        %s298 = scalar_lea.vmem [#allocation7], %s297
        %p299 = pneg %p169
        %p300 = pneg %p166
        %s301 = sand.u32 %s28, 1
        %s302 = scalar_lea.sflag [#allocation9], %s301
        %s303 = sand.u32 %s156, 1
        %s304 = smul.addr %s303, 16
        %s305 = scalar_lea.vmem [#allocation8], %s304
        %p306 = pneg %p195
        %p307 = pneg %p192
        %s308 = sand.u32 %s28, 1
        %s309 = scalar_lea.sflag [#allocation9], %s308
        %s310 = sand.u32 %s182, 1
        %s311 = smul.addr %s310, 16
        %s312 = scalar_lea.vmem [#allocation10], %s311
        %p313 = scmp.lt.s32.totalorder %s28, 2
        %s314 = scalar_select %p313, %s28, 2
        %s315 = smul.addr %s314, 8
        %s316 = scalar_lea.vmem %s1, %s315
        %v318 = vld [vmem:[%s266] sm:$0xf]
        %v319 = vld [vmem:[#allocation5] sm:$0xff]
        %v320 = vld [vmem:[#allocation5 + $0x8] sm:$0xff]
        %v321 = vld [vmem:[#allocation5 + $0x10] sm:$0xff]
        %v322 = vld [vmem:[#allocation5 + $0x18] sm:$0xff]
        %v327 = vunpack.c.l.b16 %v319
        %v328 = vunpack.c.h.b16 %v319
        %v329 = vunpack.c.l.b16 %v320
        %v330 = vunpack.c.h.b16 %v320
        %v331 = vunpack.c.l.b16 %v321
        %v332 = vunpack.c.h.b16 %v321
        %v333 = vunpack.c.l.b16 %v322
        %v334 = vunpack.c.h.b16 %v322
        %v335 = vpack.c.b16 %v329, %v327
        %v336 = vpack.c.b16 %v330, %v328
        %v337 = vpack.c.b16 %v333, %v331
        %v338 = vpack.c.b16 %v334, %v332
        %vm343 = vcmask 261120
        %v345 = vsel %vm343, %v318, 0
        %347 = vmatprep.subr.bf16.mxu0 %v336
        %348 = vmatpush1.bf16.msra.mxu0 %v335
        %349 = vmatprep.subr.bf16.mxu0 %v338
        %350 = vmatpush1.bf16.msra.mxu0 %v337
        %351 = vmatprep.subr.bf16.mxu0 0
        %352 = vmatpush1.bf16.msra.mxu0 0
        %353 = vmatprep.subr.bf16.mxu0 0
        %354 = vmatpush1.bf16.msra.mxu0 0
        %355 = vmatprep.subr.bf16.mxu0 0
        %356 = vmatpush1.bf16.msra.mxu0 0
        %357 = vmatprep.subr.bf16.mxu0 0
        %358 = vmatpush1.bf16.msra.mxu0 0
        %359 = vmatprep.subr.bf16.mxu0 0
        %360 = vmatpush1.bf16.msra.mxu0 0
        %361 = vmatprep.subr.bf16.mxu0 0
        %362 = vmatpush1.bf16.msra.mxu0 0
        %363 = vmatprep.subr.bf16.mxu0 0
        %364 = vmatpush1.bf16.msra.mxu0 0
        %365 = vmatprep.subr.bf16.mxu0 0
        %366 = vmatpush1.bf16.msra.mxu0 0
        %367 = vmatprep.subr.bf16.mxu0 0
        %368 = vmatpush1.bf16.msra.mxu0 0
        %369 = vmatprep.subr.bf16.mxu0 0
        %370 = vmatpush1.bf16.msra.mxu0 0
        %371 = vmatprep.subr.bf16.mxu0 0
        %372 = vmatpush1.bf16.msra.mxu0 0
        %373 = vmatprep.subr.bf16.mxu0 0
        %374 = vmatpush1.bf16.msra.mxu0 0
        %375 = vmatprep.subr.bf16.mxu0 0
        %376 = vmatpush1.bf16.msra.mxu0 0
        %377 = vmatprep.subr.bf16.mxu0 0
        %378 = vmatpush1.bf16.msra.mxu0 0
        %379 = vmatprep.mubr.bf16.mxu0 0
        %380 = vmatmul.mubr.bf16.gmra.mrb[0].mxu0 %v345
        %v381 = vpop.f32.mrb[0].mxu0
        %v382 = vadd.f32 0.0, %v381
        %v383 = vpop.f32.mrb[0].mxu0
        %v384 = vadd.f32 0.0, %v383
        %v385 = vpop.f32.mrb[0].mxu0
        %v386 = vpop.f32.mrb[0].mxu0
        %387 = vdwg.mxu0
        %388 = vst [vmem:[%s312] sm:$0xff] %v382
        %389 = vst [vmem:[%s312 + $0x8] sm:$0xff] %v384
        %v390 = vld [vmem:[%s2] sm:$0xff]
        %v391 = vld [vmem:[%s2 + $0x8] sm:$0xff]
        %v392 = vld [vmem:[%s2 + $0x10] sm:$0xff]
        %v393 = vld [vmem:[%s2 + $0x18] sm:$0xff]
        %v398 = vunpack.c.l.b16 %v390
        %v399 = vunpack.c.h.b16 %v390
        %v400 = vunpack.c.l.b16 %v391
        %v401 = vunpack.c.h.b16 %v391
        %v402 = vunpack.c.l.b16 %v392
        %v403 = vunpack.c.h.b16 %v392
        %v404 = vunpack.c.l.b16 %v393
        %v405 = vunpack.c.h.b16 %v393
        %v406 = vpack.c.b16 %v400, %v398
        %v407 = vpack.c.b16 %v401, %v399
        %v408 = vpack.c.b16 %v404, %v402
        %v409 = vpack.c.b16 %v405, %v403
        %414 = vmatprep.subr.bf16.mxu0 %v407
        %415 = vmatpush1.bf16.msra.mxu0 %v406
        %416 = vmatprep.subr.bf16.mxu0 %v409
        %417 = vmatpush1.bf16.msra.mxu0 %v408
        %418 = vmatprep.subr.bf16.mxu0 0
        %419 = vmatpush1.bf16.msra.mxu0 0
        %420 = vmatprep.subr.bf16.mxu0 0
        %421 = vmatpush1.bf16.msra.mxu0 0
        %422 = vmatprep.subr.bf16.mxu0 0
        %423 = vmatpush1.bf16.msra.mxu0 0
        %424 = vmatprep.subr.bf16.mxu0 0
        %425 = vmatpush1.bf16.msra.mxu0 0
        %426 = vmatprep.subr.bf16.mxu0 0
        %427 = vmatpush1.bf16.msra.mxu0 0
        %428 = vmatprep.subr.bf16.mxu0 0
        %429 = vmatpush1.bf16.msra.mxu0 0
        %430 = vmatprep.subr.bf16.mxu0 0
        %431 = vmatpush1.bf16.msra.mxu0 0
        %432 = vmatprep.subr.bf16.mxu0 0
        %433 = vmatpush1.bf16.msra.mxu0 0
        %434 = vmatprep.subr.bf16.mxu0 0
        %435 = vmatpush1.bf16.msra.mxu0 0
        %436 = vmatprep.subr.bf16.mxu0 0
        %437 = vmatpush1.bf16.msra.mxu0 0
        %438 = vmatprep.subr.bf16.mxu0 0
        %439 = vmatpush1.bf16.msra.mxu0 0
        %440 = vmatprep.subr.bf16.mxu0 0
        %441 = vmatpush1.bf16.msra.mxu0 0
        %442 = vmatprep.subr.bf16.mxu0 0
        %443 = vmatpush1.bf16.msra.mxu0 0
        %444 = vmatprep.subr.bf16.mxu0 0
        %445 = vmatpush1.bf16.msra.mxu0 0
        %446 = vmatprep.mubr.bf16.mxu0 0
        %447 = vmatmul.mubr.bf16.gmra.mrb[0].mxu0 %v345
        %v448 = vpop.f32.mrb[0].mxu0
        %v449 = vadd.f32 0.0, %v448
        %v450 = vpop.f32.mrb[0].mxu0
        %v451 = vadd.f32 0.0, %v450
        %v452 = vpop.f32.mrb[0].mxu0
        %v453 = vpop.f32.mrb[0].mxu0
        %454 = vdwg.mxu0
        %v455 = vmax.f32 %v449, %v451
        %456 = vmax.xlane.f32.xlu0 %v455
        %v457 = vpop.xlane.xlu0 %456
        %v458 = vsub.f32 %v449, %v457
        %v459 = vsub.f32 %v451, %v457
        %v460 = vmul.f32 %v458, 1.442695
        %v461 = vpow.pop %v460
        %v462 = vmul.f32 %v459, 1.442695
        %v463 = vpow.pop %v462
        %v464 = vadd.f32 %v461, %v463
        %465 = vadd.xlane.f32.xlu0 %v464
        %v466 = vpop.xlane.xlu0 %465
        %v467 = vrcp.pop %v466
        %v468 = vmul.f32 %v461, %v467
        %v469 = vmul.f32 %v463, %v467
        %470 = vst [vmem:[%s298] sm:$0xff] %v468
        %471 = vst [vmem:[%s298 + $0x8] sm:$0xff] %v469
        %v472 = vld [vmem:[%s316] sm:$0xff]
        %v473 = vmul.f32 %v472, 1.442695
        %v474 = vpow.pop %v473
        %476 = vset.pattern.permute.xlu0 0
        %477 = vperm.xlu0 %476, %v474
        %v478 = vpop.permute.xlu0 %477
        %v480 = vmul.f32 %v478, %v468
        %v481 = vmul.f32 %v478, %v469
        %482 = vst [vmem:[%s305] sm:$0xff] %v480
        %483 = vst [vmem:[%s305 + $0x8] sm:$0xff] %v481
        %s484 = sand.u32 %s130, 1
        %s485 = scalar_lea.sflag [#allocation4], %s484
        %s486 = sand.u32 %s130, 1
        %s487 = smul.addr %s486, 16
        %s488 = scalar_lea.vmem [#allocation7], %s487
        %s489 = sand.u32 %s28, 1
        %s490 = scalar_lea.sflag [#allocation9], %s489
        %s491 = sand.u32 %s156, 1
        %s492 = smul.addr %s491, 16
        %s493 = scalar_lea.vmem [#allocation8], %s492
        %s494 = sand.u32 %s28, 1
        %s495 = scalar_lea.sflag [#allocation9], %s494
        %s496 = sand.u32 %s182, 1
        %s497 = smul.addr %s496, 16
        %s498 = scalar_lea.vmem [#allocation10], %s497
        // Predicated region
        $region45: #{tpu_custom_call.1} parent=35 // pred_check
          %p499 = pneg %p140
        $region46: #{tpu_custom_call.1} parent=35 // pred_check_branch
          %501 = sbr.rel (%p499) target = $region48
        $region47: #{tpu_custom_call.1} parent=35 // pred_region
          %s503 = ssub.s32 256, 256
          %504 = vsyncadd %s485, %s503
          %s505 = smul.addr %s28, 2
          %s506 = smul.addr %s505, 128
          %s507 = scalar_lea.hbm %s4, %s506
          %s509 = sshll.u32 %s488, 4
          %s510 = int_to_ptr.vmem [resolvable:$true] %s509
          %512 = dma.vmem_to_hbm [thread:$0]  %s510, 256, %s507, %s485
        $region48: #{tpu_custom_call.1} parent=35 // pred_fallthru
          _
        // Predicated region
        $region49: #{tpu_custom_call.1} parent=35 // pred_check
          %p513 = pneg %p166
        $region50: #{tpu_custom_call.1} parent=35 // pred_check_branch
          %515 = sbr.rel (%p513) target = $region52
        $region51: #{tpu_custom_call.1} parent=35 // pred_region
          %s517 = ssub.s32 256, 256
          %518 = vsyncadd %s490, %s517
          %s519 = smul.addr %s28, 2
          %s520 = smul.addr %s519, 128
          %s521 = scalar_lea.hbm %s5, %s520
          %s523 = sshll.u32 %s493, 4
          %s524 = int_to_ptr.vmem [resolvable:$true] %s523
          %526 = dma.vmem_to_hbm [thread:$0]  %s524, 256, %s521, %s490
        $region52: #{tpu_custom_call.1} parent=35 // pred_fallthru
          _
        // Predicated region
        $region53: #{tpu_custom_call.1} parent=35 // pred_check
          %p527 = pneg %p192
        $region54: #{tpu_custom_call.1} parent=35 // pred_check_branch
          %529 = sbr.rel (%p527) target = $region56
        $region55: #{tpu_custom_call.1} parent=35 // pred_region
          %s531 = ssub.s32 256, 256
          %532 = vsyncadd %s495, %s531
          %s533 = smul.addr %s28, 2
          %s534 = smul.addr %s533, 128
          %s535 = scalar_lea.hbm %s6, %s534
          %s537 = sshll.u32 %s498, 4
          %s538 = int_to_ptr.vmem [resolvable:$true] %s537
          %540 = dma.vmem_to_hbm [thread:$0]  %s538, 256, %s535, %s495
        $region56: #{tpu_custom_call.1} parent=35 // pred_fallthru
          _
      $region36: #{tpu_custom_call.1} parent=5 // pred_fallthru
        _
      %p541 = scmp.le.s32.totalorder 2, %s23
      // Predicated region
      $region57: #{tpu_custom_call.1} parent=5 // pred_check
        %p542 = pneg %p541
      $region58: #{tpu_custom_call.1} parent=5 // pred_check_branch
        %544 = sbr.rel (%p542) target = $region60
      $region59: #{tpu_custom_call.1} parent=5 // pred_region
        %s545 = ssub.s32 %s23, 2
        // Predicated region
        $region61: #{tpu_custom_call.1} parent=59 // pred_check
          %p546 = pneg %p146
        $region62: #{tpu_custom_call.1} parent=59 // pred_check_branch
          %548 = sbr.rel (%p546) target = $region64
        $region63: #{tpu_custom_call.1} parent=59 // pred_region
          %s549 = sand.u32 %s131, 1
          %s550 = scalar_lea.sflag [#allocation4], %s549
          %s551 = sand.u32 %s131, 1
          %s552 = smul.addr %s551, 16
          %s553 = scalar_lea.vmem [#allocation7], %s552
          %554 = dma.done %s550, 256
        $region64: #{tpu_custom_call.1} parent=59 // pred_fallthru
          _
        // Predicated region
        $region65: #{tpu_custom_call.1} parent=59 // pred_check
          %p555 = pneg %p172
        $region66: #{tpu_custom_call.1} parent=59 // pred_check_branch
          %557 = sbr.rel (%p555) target = $region68
        $region67: #{tpu_custom_call.1} parent=59 // pred_region
          %s558 = sand.u32 %s29, 1
          %s559 = scalar_lea.sflag [#allocation9], %s558
          %s560 = sand.u32 %s157, 1
          %s561 = smul.addr %s560, 16
          %s562 = scalar_lea.vmem [#allocation8], %s561
          %563 = dma.done %s559, 256
        $region68: #{tpu_custom_call.1} parent=59 // pred_fallthru
          _
        // Predicated region
        $region69: #{tpu_custom_call.1} parent=59 // pred_check
          %p564 = pneg %p198
        $region70: #{tpu_custom_call.1} parent=59 // pred_check_branch
          %566 = sbr.rel (%p564) target = $region72
        $region71: #{tpu_custom_call.1} parent=59 // pred_region
          %s567 = sand.u32 %s29, 1
          %s568 = scalar_lea.sflag [#allocation9], %s567
          %s569 = sand.u32 %s183, 1
          %s570 = smul.addr %s569, 16
          %s571 = scalar_lea.vmem [#allocation10], %s570
          %572 = dma.done %s568, 256
        $region72: #{tpu_custom_call.1} parent=59 // pred_fallthru
          _
      $region60: #{tpu_custom_call.1} parent=5 // pred_fallthru
        _
    $region6: #{tpu_custom_call.1} parent=1 // loop_footer
      %s27 = sadd.s32 1, %s23
    $region7: #{tpu_custom_call.1} parent=1 // loop_footer_branch
      %22 = sbr.rel target = $region3
    $region8: #{tpu_custom_call.1} parent=1 // loop_exit
      _
    %573 = vsyncpa [#allocation3], 1
    %s574 = scalar_lea.sflag [#allocation3], 1
    %575 = vsyncpa %s574, 1
    %576 = vsyncpa [#allocation6], 1
    %577 = vsyncpa [#allocation4], 1
    %s578 = scalar_lea.sflag [#allocation4], 1
    %579 = vsyncpa %s578, 1
    %580 = vsyncpa [#allocation9], 1
    %s581 = scalar_lea.sflag [#allocation9], 1
    %582 = vsyncpa %s581, 1

</llo_original>
